<compile_context>
chip_gen: v6e
topology: v6e:2x2x1
jax: 0.10.0
libtpu: 0.0.40
codegen_flags: <defaults>
</compile_context>

<pallas_src>
import functools
import math

import jax
import jax.numpy as jnp
from jax import lax
from jax.experimental import pallas as pl
from jax.experimental.pallas import tpu as pltpu


def _round_up(x: int, m: int) -> int:
    return ((x + m - 1) // m) * m


def _vmem_capacity_bytes() -> int:
    """Generation-aware physical VMEM (128 MiB v5e/v6e, 64 MiB/TC v7x)."""
    try:
        return int(pltpu.get_tpu_info().vmem_capacity_bytes)
    except Exception:
        return 64 << 20  # conservative fallback (v7x per-TensorCore)


# --------------------------------------------------------------------------
# Path A: embedding table resident in VMEM, rows gathered by dynamic slices.
# --------------------------------------------------------------------------
def _embed_vmem_kernel(ids_ref, table_ref, out_ref, *, scale: float):
    # ids_ref:   SMEM (T_pad,) int32  -- all padded token ids (scalar prefetch)
    # table_ref: VMEM (V, D)          -- resident embedding table
    # out_ref:   VMEM (TILE_T, D)     -- dense output tile
    tile_t = out_ref.shape[0]
    base = pl.program_id(0) * tile_t
    scale_f32 = jnp.float32(scale)

    UNROLL = 8  # TILE_T is always a multiple of 8

    @pl.loop(0, tile_t // UNROLL)
    def _(g):
        t0 = pl.multiple_of(g * UNROLL, UNROLL)
        for u in range(UNROLL):
            t = t0 + u
            tok = ids_ref[base + t]                      # scalar id from SMEM
            row = table_ref[pl.ds(tok, 1), :]            # (1, D) gather
            out_ref[pl.ds(t, 1), :] = (
                row.astype(jnp.float32) * scale_f32
            ).astype(out_ref.dtype)


# --------------------------------------------------------------------------
# Path B: table stays in HBM; manual DMA row gather with 4 copies in flight.
# --------------------------------------------------------------------------
def _embed_hbm_kernel(ids_ref, table_hbm, out_ref, row_buf, sem, *, scale: float):
    # ids_ref:   SMEM (T_pad,) int32
    # table_hbm: HBM  (V, D)    (memory_space=pl.ANY)
    # out_ref:   VMEM (TILE_T, D)
    # row_buf:   VMEM (NBUF, 1, D) scratch ring
    # sem:       DMA semaphores (NBUF,)
    tile_t = out_ref.shape[0]
    nbuf = row_buf.shape[0]
    lookahead = nbuf - 1  # outstanding DMAs
    base = pl.program_id(0) * tile_t
    scale_f32 = jnp.float32(scale)

    def start_fetch(t, slot):
        tok = ids_ref[base + t]
        pltpu.make_async_copy(
            table_hbm.at[pl.ds(tok, 1), :], row_buf.at[slot], sem.at[slot]
        ).start()

    # Prime the ring.
    for s in range(min(lookahead, tile_t)):
        start_fetch(s, s)

    @pl.loop(0, tile_t)
    def _(t):
        slot = lax.rem(t, nbuf)
        pltpu.make_async_copy(
            table_hbm.at[pl.ds(0, 1), :], row_buf.at[slot], sem.at[slot]
        ).wait()
        out_ref[pl.ds(t, 1), :] = (
            row_buf[slot].astype(jnp.float32) * scale_f32
        ).astype(out_ref.dtype)

        nxt = t + lookahead

        @pl.when(nxt < tile_t)
        def _():
            start_fetch(nxt, lax.rem(nxt, nbuf))


# --------------------------------------------------------------------------
# Wrapper
# --------------------------------------------------------------------------
def input_embedding(
    x: jax.Array,
    table: jax.Array,
    *,
    tile_t: int = 512,
    force_hbm_gather: bool = False,
) -> jax.Array:
    """Equivalent of InputEmbedding.forward: embedding(x) * sqrt(d_model)."""
    B, S = x.shape
    V, D = table.shape
    n_tok = B * S
    scale = float(math.sqrt(D))
    assert tile_t % 8 == 0 and tile_t >= 8

    # ---- token tiling: sublane-dense, and >=2 tiles when possible (v7x). ----
    t8 = _round_up(max(n_tok, 1), 8)
    if t8 <= tile_t and n_tok >= 16:
        # Whole problem fits one tile: split in two so v7x's second TC is used.
        TILE_T = _round_up((t8 + 1) // 2, 8)
    else:
        TILE_T = min(tile_t, t8)
    T_pad = _round_up(n_tok, TILE_T)
    n_tiles = T_pad // TILE_T

    # ---- ids: clamp, pad, scalar-prefetch (SMEM). ----
    ids = jnp.clip(x.reshape(n_tok).astype(jnp.int32), 0, V - 1)
    ids = jnp.pad(ids, (0, T_pad - n_tok))

    out_dtype = table.dtype
    itemsize_tab = jnp.dtype(table.dtype).itemsize
    itemsize_out = jnp.dtype(out_dtype).itemsize

    # ---- VMEM budgeting (generation-aware). ----
    vmem_cap = _vmem_capacity_bytes()
    vmem_budget = int(0.85 * vmem_cap)

    # Table block index is constant -> request single buffering if available.
    try:
        table_spec = pl.BlockSpec(
            (V, D), lambda i, ids_ref: (0, 0), pipeline_mode=pl.Buffered(1)
        )
        table_bufs = 1
    except Exception:
        table_spec = pl.BlockSpec((V, D), lambda i, ids_ref: (0, 0))
        table_bufs = 2

    table_resident_bytes = table_bufs * V * D * itemsize_tab
    out_block_bytes = 2 * TILE_T * D * itemsize_out  # double-buffered output
    headroom = 4 << 20

    use_vmem_table = (not force_hbm_gather) and (
        table_resident_bytes + out_block_bytes + headroom <= vmem_budget
    )

    NBUF = 5  # ring buffers for the HBM gather path (4 DMAs in flight)

    if use_vmem_table:
        need = table_resident_bytes + out_block_bytes + headroom
        kernel = functools.partial(_embed_vmem_kernel, scale=scale)
        in_specs = [table_spec]
        scratch_shapes = []
    else:
        need = out_block_bytes + NBUF * 8 * D * itemsize_tab + headroom
        kernel = functools.partial(_embed_hbm_kernel, scale=scale)
        in_specs = [pl.BlockSpec(memory_space=pl.ANY)]  # table stays in HBM
        scratch_shapes = [
            pltpu.VMEM((NBUF, 1, D), table.dtype),
            pltpu.SemaphoreType.DMA((NBUF,)),
        ]

    vmem_limit = int(min(max(need, 16 << 20), vmem_budget))

    out = pl.pallas_call(
        kernel,
        out_shape=jax.ShapeDtypeStruct((T_pad, D), out_dtype),
        grid_spec=pltpu.PrefetchScalarGridSpec(
            num_scalar_prefetch=1,
            grid=(n_tiles,),
            in_specs=in_specs,
            out_specs=pl.BlockSpec((TILE_T, D), lambda i, ids_ref: (i, 0)),
            scratch_shapes=scratch_shapes,
        ),
        compiler_params=pltpu.CompilerParams(
            dimension_semantics=("parallel",),
            vmem_limit_bytes=vmem_limit,
        ),
    )(ids, table)

    return out[:n_tok].reshape(B, S, D)


if __name__ == "__main__":
    # Small shapes consistent with the module: vocab=256, d_model=128, batch=2, seq=8.
    vocab_size, d_model = 256, 128
    batch, seq = 2, 8

    key = jax.random.PRNGKey(0)
    k_tab, k_ids = jax.random.split(key)

    # torch.nn.Embedding default init is N(0, 1) -> deterministic synthetic weights.
    table = jax.random.normal(k_tab, (vocab_size, d_model), dtype=jnp.float32)
    x = jax.random.randint(k_ids, (batch, seq), 0, vocab_size, dtype=jnp.int32)

    ref = table[x] * math.sqrt(d_model)

    # Path A: VMEM-resident table gather.
    out = jax.block_until_ready(input_embedding(x, table))
    assert out.shape == (batch, seq, d_model), out.shape
    assert out.dtype == table.dtype
    assert jnp.allclose(out, ref, atol=1e-5, rtol=1e-5), "VMEM path mismatch"

    # Path B: large-vocab HBM DMA-gather path, forced on the same small inputs.
    out_hbm = jax.block_until_ready(input_embedding(x, table, force_hbm_gather=True))
    assert jnp.allclose(out_hbm, ref, atol=1e-5, rtol=1e-5), "HBM path mismatch"

    print("KERNEL_OK")
</pallas_src>

<mosaic_0001>
module attributes {stable_mosaic.version = 11 : i64} {
  func.func @_embed_vmem_kernel(%arg0: i32, %arg1: memref<16xi32, #tpu.memory_space<smem>>, %arg2: memref<256x128xf32, #tpu.memory_space<vmem>>, %arg3: memref<8x128xf32, #tpu.memory_space<vmem>>) attributes {dimension_semantics = [#tpu.dimension_semantics<parallel>], iteration_bounds = array<i64: 2>, scalar_prefetch = 1 : i64, scratch_operands = 0 : i64, tpu.core_type = #tpu.core_type<tc>, window_params = [{pipeline_mode = #tpu.pipeline_mode<synchronous>, transform_indices = @transform_0, window_bounds = array<i64: 256, 128>}, {transform_indices = @transform_1, window_bounds = array<i64: 8, 128>}]} {
    %c8_i32 = arith.constant 8 : i32
    %0 = arith.muli %arg0, %c8_i32 : i32
    %cst = arith.constant 11.3137083 : f32
    %c0_i32 = arith.constant 0 : i32
    %c1_i32 = arith.constant 1 : i32
    %1 = arith.muli %c0_i32, %c1_i32 : i32
    %c0_i32_0 = arith.constant 0 : i32
    %2 = arith.addi %c0_i32_0, %1 : i32
    %c8_i32_1 = arith.constant 8 : i32
    %3 = arith.muli %2, %c8_i32_1 : i32
    %4 = tpu.assume_multiple %3, 8 : i32
    %c0_i32_2 = arith.constant 0 : i32
    %5 = arith.addi %4, %c0_i32_2 : i32
    %6 = arith.addi %0, %5 : i32
    %7 = arith.index_cast %6 : i32 to index
    %8 = memref.load %arg1[%7] : memref<16xi32, #tpu.memory_space<smem>>
    %9 = arith.index_cast %8 : i32 to index
    %c0 = arith.constant 0 : index
    %10 = vector.load %arg2[%9, %c0] : memref<256x128xf32, #tpu.memory_space<vmem>>, vector<1x128xf32>
    %11 = vector.broadcast %cst : f32 to vector<1x128xf32>
    %12 = arith.mulf %10, %11 : vector<1x128xf32>
    %13 = arith.index_cast %5 : i32 to index
    %c0_3 = arith.constant 0 : index
    %14 = vector.load %arg3[%13, %c0_3] : memref<8x128xf32, #tpu.memory_space<vmem>>, vector<1x128xf32>
    tpu.vector_store %arg3[%13, %c0_3], %12 {strides = array<i32>} : memref<8x128xf32, #tpu.memory_space<vmem>>, vector<1x128xf32>,
    %c1_i32_4 = arith.constant 1 : i32
    %15 = arith.addi %4, %c1_i32_4 : i32
    %16 = arith.addi %0, %15 : i32
    %17 = arith.index_cast %16 : i32 to index
    %18 = memref.load %arg1[%17] : memref<16xi32, #tpu.memory_space<smem>>
    %19 = arith.index_cast %18 : i32 to index
    %c0_5 = arith.constant 0 : index
    %20 = vector.load %arg2[%19, %c0_5] : memref<256x128xf32, #tpu.memory_space<vmem>>, vector<1x128xf32>
    %21 = vector.broadcast %cst : f32 to vector<1x128xf32>
    %22 = arith.mulf %20, %21 : vector<1x128xf32>
    %23 = arith.index_cast %15 : i32 to index
    %c0_6 = arith.constant 0 : index
    %24 = vector.load %arg3[%23, %c0_6] : memref<8x128xf32, #tpu.memory_space<vmem>>, vector<1x128xf32>
    tpu.vector_store %arg3[%23, %c0_6], %22 {strides = array<i32>} : memref<8x128xf32, #tpu.memory_space<vmem>>, vector<1x128xf32>,
    %c2_i32 = arith.constant 2 : i32
    %25 = arith.addi %4, %c2_i32 : i32
    %26 = arith.addi %0, %25 : i32
    %27 = arith.index_cast %26 : i32 to index
    %28 = memref.load %arg1[%27] : memref<16xi32, #tpu.memory_space<smem>>
    %29 = arith.index_cast %28 : i32 to index
    %c0_7 = arith.constant 0 : index
    %30 = vector.load %arg2[%29, %c0_7] : memref<256x128xf32, #tpu.memory_space<vmem>>, vector<1x128xf32>
    %31 = vector.broadcast %cst : f32 to vector<1x128xf32>
    %32 = arith.mulf %30, %31 : vector<1x128xf32>
    %33 = arith.index_cast %25 : i32 to index
    %c0_8 = arith.constant 0 : index
    %34 = vector.load %arg3[%33, %c0_8] : memref<8x128xf32, #tpu.memory_space<vmem>>, vector<1x128xf32>
    tpu.vector_store %arg3[%33, %c0_8], %32 {strides = array<i32>} : memref<8x128xf32, #tpu.memory_space<vmem>>, vector<1x128xf32>,
    %c3_i32 = arith.constant 3 : i32
    %35 = arith.addi %4, %c3_i32 : i32
    %36 = arith.addi %0, %35 : i32
    %37 = arith.index_cast %36 : i32 to index
    %38 = memref.load %arg1[%37] : memref<16xi32, #tpu.memory_space<smem>>
    %39 = arith.index_cast %38 : i32 to index
    %c0_9 = arith.constant 0 : index
    %40 = vector.load %arg2[%39, %c0_9] : memref<256x128xf32, #tpu.memory_space<vmem>>, vector<1x128xf32>
    %41 = vector.broadcast %cst : f32 to vector<1x128xf32>
    %42 = arith.mulf %40, %41 : vector<1x128xf32>
    %43 = arith.index_cast %35 : i32 to index
    %c0_10 = arith.constant 0 : index
    %44 = vector.load %arg3[%43, %c0_10] : memref<8x128xf32, #tpu.memory_space<vmem>>, vector<1x128xf32>
    tpu.vector_store %arg3[%43, %c0_10], %42 {strides = array<i32>} : memref<8x128xf32, #tpu.memory_space<vmem>>, vector<1x128xf32>,
    %c4_i32 = arith.constant 4 : i32
    %45 = arith.addi %4, %c4_i32 : i32
    %46 = arith.addi %0, %45 : i32
    %47 = arith.index_cast %46 : i32 to index
    %48 = memref.load %arg1[%47] : memref<16xi32, #tpu.memory_space<smem>>
    %49 = arith.index_cast %48 : i32 to index
    %c0_11 = arith.constant 0 : index
    %50 = vector.load %arg2[%49, %c0_11] : memref<256x128xf32, #tpu.memory_space<vmem>>, vector<1x128xf32>
    %51 = vector.broadcast %cst : f32 to vector<1x128xf32>
    %52 = arith.mulf %50, %51 : vector<1x128xf32>
    %53 = arith.index_cast %45 : i32 to index
    %c0_12 = arith.constant 0 : index
    %54 = vector.load %arg3[%53, %c0_12] : memref<8x128xf32, #tpu.memory_space<vmem>>, vector<1x128xf32>
    tpu.vector_store %arg3[%53, %c0_12], %52 {strides = array<i32>} : memref<8x128xf32, #tpu.memory_space<vmem>>, vector<1x128xf32>,
    %c5_i32 = arith.constant 5 : i32
    %55 = arith.addi %4, %c5_i32 : i32
    %56 = arith.addi %0, %55 : i32
    %57 = arith.index_cast %56 : i32 to index
    %58 = memref.load %arg1[%57] : memref<16xi32, #tpu.memory_space<smem>>
    %59 = arith.index_cast %58 : i32 to index
    %c0_13 = arith.constant 0 : index
    %60 = vector.load %arg2[%59, %c0_13] : memref<256x128xf32, #tpu.memory_space<vmem>>, vector<1x128xf32>
    %61 = vector.broadcast %cst : f32 to vector<1x128xf32>
    %62 = arith.mulf %60, %61 : vector<1x128xf32>
    %63 = arith.index_cast %55 : i32 to index
    %c0_14 = arith.constant 0 : index
    %64 = vector.load %arg3[%63, %c0_14] : memref<8x128xf32, #tpu.memory_space<vmem>>, vector<1x128xf32>
    tpu.vector_store %arg3[%63, %c0_14], %62 {strides = array<i32>} : memref<8x128xf32, #tpu.memory_space<vmem>>, vector<1x128xf32>,
    %c6_i32 = arith.constant 6 : i32
    %65 = arith.addi %4, %c6_i32 : i32
    %66 = arith.addi %0, %65 : i32
    %67 = arith.index_cast %66 : i32 to index
    %68 = memref.load %arg1[%67] : memref<16xi32, #tpu.memory_space<smem>>
    %69 = arith.index_cast %68 : i32 to index
    %c0_15 = arith.constant 0 : index
    %70 = vector.load %arg2[%69, %c0_15] : memref<256x128xf32, #tpu.memory_space<vmem>>, vector<1x128xf32>
    %71 = vector.broadcast %cst : f32 to vector<1x128xf32>
    %72 = arith.mulf %70, %71 : vector<1x128xf32>
    %73 = arith.index_cast %65 : i32 to index
    %c0_16 = arith.constant 0 : index
    %74 = vector.load %arg3[%73, %c0_16] : memref<8x128xf32, #tpu.memory_space<vmem>>, vector<1x128xf32>
    tpu.vector_store %arg3[%73, %c0_16], %72 {strides = array<i32>} : memref<8x128xf32, #tpu.memory_space<vmem>>, vector<1x128xf32>,
    %c7_i32 = arith.constant 7 : i32
    %75 = arith.addi %4, %c7_i32 : i32
    %76 = arith.addi %0, %75 : i32
    %77 = arith.index_cast %76 : i32 to index
    %78 = memref.load %arg1[%77] : memref<16xi32, #tpu.memory_space<smem>>
    %79 = arith.index_cast %78 : i32 to index
    %c0_17 = arith.constant 0 : index
    %80 = vector.load %arg2[%79, %c0_17] : memref<256x128xf32, #tpu.memory_space<vmem>>, vector<1x128xf32>
    %81 = vector.broadcast %cst : f32 to vector<1x128xf32>
    %82 = arith.mulf %80, %81 : vector<1x128xf32>
    %83 = arith.index_cast %75 : i32 to index
    %c0_18 = arith.constant 0 : index
    %84 = vector.load %arg3[%83, %c0_18] : memref<8x128xf32, #tpu.memory_space<vmem>>, vector<1x128xf32>
    tpu.vector_store %arg3[%83, %c0_18], %82 {strides = array<i32>} : memref<8x128xf32, #tpu.memory_space<vmem>>, vector<1x128xf32>,
    %c1_i32_19 = arith.constant 1 : i32
    return
  }
  func.func @transform_0(%arg0: i32, %arg1: memref<16xi32, #tpu.memory_space<smem>>) -> (i32, i32) {
    %c0_i32 = arith.constant 0 : i32
    %c0_i32_0 = arith.constant 0 : i32
    %c0_i32_1 = arith.constant 0 : i32
    return %c0_i32, %c0_i32_0 : i32, i32
  }
  func.func @transform_1(%arg0: i32, %arg1: memref<16xi32, #tpu.memory_space<smem>>) -> (i32, i32) {
    %c0_i32 = arith.constant 0 : i32
    %c0_i32_0 = arith.constant 0 : i32
    return %arg0, %c0_i32 : i32, i32
  }
}

</mosaic_0001>

<llo_original>
// kernel: tpu_custom_call.1
$region0: #{tpu_custom_call.1}
  #allocation0 [shape = 'u32[]', space=smem, size = 0x4, offset = 0x4, fixed_abs, tag = 'smem constant byte address 0x4 - core index']
  #allocation1 [shape = 'u32[144,128]{1,0:T(1,128)}', space=vmem, size = 0x12000, scoped, tag = 'internal scratch']
  #allocation2 [shape = 's32[1]{0}', space=sflag, size = 0x4, scoped, tag = 'scoped memory for tpu_custom_call.1']
  #allocation3 [shape = 'u8[512]{0}', space=smem, size = 0x200, scoped, tag = 'prefetched SMEM operand 0']
  %s0 = inlined_call_operand.hbm [shape: s32[16], index: 0, kind: input, shape index: {}]
  %s1 = inlined_call_operand.hbm [shape: f32[256,128], index: 1, kind: input, shape index: {}]
  %s2 = inlined_call_operand.hbm [shape: f32[16,128], index: 2, kind: output, shape index: {}]
  %s3 = sld [smem:[#allocation0]]
  $region41: #{tpu_custom_call.1} parent=0
    _
  %s5 = ssub.s32 1, %s3
  %s6 = scalar_select 0, %s5, %s3
  %8 = dma.hbm_to_smem %s0, 16, [#allocation3], [#allocation2]
  %9 = dma.done [#allocation2], 16
  %10 = sfence
  $region1: #{tpu_custom_call.1} parent=0
    #allocation4 [shape = 'u8[131072]{0}', space=vmem, size = 0x20000, scoped, tag = 'input window, operand 1, single buffered']
    #allocation5 [shape = 's32[2]{0}', space=sflag, size = 0x8, scoped, tag = 'scoped memory for tpu_custom_call.1']
    #allocation6 [shape = 's32[2]{0}', space=sflag, size = 0x8, scoped, tag = 'scoped memory for tpu_custom_call.1']
    #allocation7 [shape = 'u8[8192]{0}', space=vmem, size = 0x2000, scoped, tag = 'output window, operand 0']
    %11 = vsyncpa [#allocation5], 0
    %12 = vsyncpa [#allocation6], 0
    %s13 = scalar_lea.sflag [#allocation6], 1
    %14 = vsyncpa %s13, 0
    loop: start=0, step=1, limit=4
    $region2: #{tpu_custom_call.1} parent=1 // loop_pre_header
      _
    $region3: #{tpu_custom_call.1} parent=1 // loop_header
      %s16 = sphi 0, %s20
      %p17 = scmp.ge.s32.totalorder %s16, 4
      %s24 = sphi 0, %s24
      %s26 = sphi 0, %s24
      %s27 = sphi 0, %s26
      %s41 = sphi 0, %s27
      %s47 = sphi 0, %s49
      %s50 = sphi 0, %s47
      %s51 = sphi 0, %s50
      %s67 = sphi 0, %s51
    $region4: #{tpu_custom_call.1} parent=1 // loop_header_branch
      %19 = sbr.rel (%p17) target = $region8
    $region5: #{tpu_custom_call.1} parent=1 // loop_body
      %s21 = ssub.s32 %s16, 1
      %s22 = ssub.s32 %s16, 2
      %s23 = sadd.s32 %s16, 1
      %s25 = sadd.s32 %s24, 1
      %p28 = scmp.eq.s32.totalorder %s16, 1
      %p29 = scmp.ne.s32.totalorder %s24, %s26
      %p30 = scmp.eq.s32.totalorder %s16, 0
      %p31 = por %p29, %p30
      %p32 = scmp.ne.s32.totalorder %s24, %s26
      %p33 = scmp.eq.s32.totalorder %s21, 1
      %p34 = por %p32, %p33
      %p35 = scmp.ne.s32.totalorder %s26, %s27
      %p36 = scmp.eq.s32.totalorder %s21, 0
      %p37 = por %p35, %p36
      %p38 = scmp.ne.s32.totalorder %s26, %s27
      %p39 = scmp.eq.s32.totalorder %s22, 1
      %p40 = por %p38, %p39
      %p42 = scmp.ne.s32.totalorder %s27, %s41
      %p43 = scmp.eq.s32.totalorder %s22, 0
      %p44 = por %p42, %p43
      %s45 = ssub.s32 %s16, %s23
      %p46 = scmp.eq.s32.totalorder %s45, 0
      %s48 = sadd.s32 %s47, 1
      %s49 = scalar_select %p46, %s47, %s48
      %p52 = pneg %p46
      %p53 = scmp.eq.s32.totalorder %s16, 1
      %p54 = por %p52, %p53
      %p55 = scmp.ne.s32.totalorder %s47, %s50
      %p56 = scmp.eq.s32.totalorder %s16, 0
      %p57 = por %p55, %p56
      %p58 = scmp.ne.s32.totalorder %s47, %s50
      %p59 = scmp.eq.s32.totalorder %s21, 1
      %p60 = por %p58, %p59
      %p61 = scmp.ne.s32.totalorder %s50, %s51
      %p62 = scmp.eq.s32.totalorder %s21, 0
      %p63 = por %p61, %p62
      %p64 = scmp.ne.s32.totalorder %s50, %s51
      %p65 = scmp.eq.s32.totalorder %s22, 1
      %p66 = por %p64, %p65
      %p68 = scmp.ne.s32.totalorder %s51, %s67
      %p69 = scmp.eq.s32.totalorder %s22, 0
      %p70 = por %p68, %p69
      %p71 = scmp.le.s32.totalorder 1, %s16
      %p72 = scmp.lt.s32.totalorder %s16, 3
      %p73 = pnand %p71, %p72
      %p74 = pneg %p73
      // Predicated region
      $region9: #{tpu_custom_call.1} parent=5 // pred_check
        _
      $region10: #{tpu_custom_call.1} parent=5 // pred_check_branch
        %76 = sbr.rel (%p73) target = $region12
      $region11: #{tpu_custom_call.1} parent=5 // pred_region
        %s77 = ssub.s32 %s16, 1
        // Predicated region
        $region13: #{tpu_custom_call.1} parent=11 // pred_check
          %p78 = pneg %p37
        $region14: #{tpu_custom_call.1} parent=11 // pred_check_branch
          %80 = sbr.rel (%p78) target = $region16
        $region15: #{tpu_custom_call.1} parent=11 // pred_region
          %s82 = ssub.s32 4096, 4096
          %83 = vsyncadd [#allocation5], %s82
          %s84 = sshll.u32 [#allocation4], 4
          %s85 = int_to_ptr.vmem [resolvable:$true] %s84
          %90 = dma.hbm_to_vmem [thread:$0]  %s1, 4096, %s85, [#allocation5], 128, 128, 8
        $region16: #{tpu_custom_call.1} parent=11 // pred_fallthru
          _
      $region12: #{tpu_custom_call.1} parent=5 // pred_fallthru
        _
      %p91 = scmp.lt.s32.totalorder %s16, 2
      // Predicated region
      $region17: #{tpu_custom_call.1} parent=5 // pred_check
        %p92 = pneg %p91
      $region18: #{tpu_custom_call.1} parent=5 // pred_check_branch
        %94 = sbr.rel (%p92) target = $region20
      $region19: #{tpu_custom_call.1} parent=5 // pred_region
        _
      $region20: #{tpu_custom_call.1} parent=5 // pred_fallthru
        _
      %p95 = scmp.le.s32.totalorder 1, %s16
      %p96 = scmp.lt.s32.totalorder %s16, 3
      %p97 = pnand %p95, %p96
      %p98 = pneg %p97
      // Predicated region
      $region21: #{tpu_custom_call.1} parent=5 // pred_check
        _
      $region22: #{tpu_custom_call.1} parent=5 // pred_check_branch
        %100 = sbr.rel (%p97) target = $region24
      $region23: #{tpu_custom_call.1} parent=5 // pred_region
        %s101 = ssub.s32 %s16, 1
        // Predicated region
        $region25: #{tpu_custom_call.1} parent=23 // pred_check
          %p102 = pneg %p37
        $region26: #{tpu_custom_call.1} parent=23 // pred_check_branch
          %104 = sbr.rel (%p102) target = $region28
        $region27: #{tpu_custom_call.1} parent=23 // pred_region
          %105 = dma.done [#allocation5], 4096
        $region28: #{tpu_custom_call.1} parent=23 // pred_fallthru
          _
        %p106 = pneg %p37
        %p107 = pneg %p34
        %p108 = pneg %p63
        %p109 = pneg %p60
        %s110 = sand.u32 %s50, 1
        %s111 = scalar_lea.sflag [#allocation6], %s110
        %s112 = sand.u32 %s50, 1
        %s113 = smul.addr %s112, 8
        %s114 = scalar_lea.vmem [#allocation7], %s113
        %s115 = smul.u32 %s21, 8
        %s116 = sadd.s32 %s115, 0
        %s117 = sld [smem:[#allocation3 + %s116]]
        %s118 = scalar_lea.vmem [#allocation4], %s117
        %v119 = vld [vmem:[%s118] sm:$0x1]
        %v120 = vmul.f32 %v119, 11.313708
        %121 = vst [vmem:[%s114] sm:$0x1] %v120
        %s122 = sadd.s32 0, 1
        %s123 = sadd.s32 %s115, %s122
        %s124 = sld [smem:[#allocation3 + %s123]]
        %s125 = scalar_lea.vmem [#allocation4], %s124
        %v126 = vld [vmem:[%s125] sm:$0x1]
        %v127 = vmul.f32 %v126, 11.313708
        %s128 = scalar_lea.vmem %s114, %s122 [#allocation7]
        %129 = vst [vmem:[%s128] sm:$0x1] %v127
        %s130 = sadd.s32 0, 2
        %s131 = sadd.s32 %s115, %s130
        %s132 = sld [smem:[#allocation3 + %s131]]
        %s133 = scalar_lea.vmem [#allocation4], %s132
        %v134 = vld [vmem:[%s133] sm:$0x1]
        %v135 = vmul.f32 %v134, 11.313708
        %s136 = scalar_lea.vmem %s114, %s130 [#allocation7]
        %137 = vst [vmem:[%s136] sm:$0x1] %v135
        %s138 = sadd.s32 0, 3
        %s139 = sadd.s32 %s115, %s138
        %s140 = sld [smem:[#allocation3 + %s139]]
        %s141 = scalar_lea.vmem [#allocation4], %s140
        %v142 = vld [vmem:[%s141] sm:$0x1]
        %v143 = vmul.f32 %v142, 11.313708
        %s144 = scalar_lea.vmem %s114, %s138 [#allocation7]
        %145 = vst [vmem:[%s144] sm:$0x1] %v143
        %s146 = sadd.s32 0, 4
        %s147 = sadd.s32 %s115, %s146
        %s148 = sld [smem:[#allocation3 + %s147]]
        %s149 = scalar_lea.vmem [#allocation4], %s148
        %v150 = vld [vmem:[%s149] sm:$0x1]
        %v151 = vmul.f32 %v150, 11.313708
        %s152 = scalar_lea.vmem %s114, %s146 [#allocation7]
        %153 = vst [vmem:[%s152] sm:$0x1] %v151
        %s154 = sadd.s32 0, 5
        %s155 = sadd.s32 %s115, %s154
        %s156 = sld [smem:[#allocation3 + %s155]]
        %s157 = scalar_lea.vmem [#allocation4], %s156
        %v158 = vld [vmem:[%s157] sm:$0x1]
        %v159 = vmul.f32 %v158, 11.313708
        %s160 = scalar_lea.vmem %s114, %s154 [#allocation7]
        %161 = vst [vmem:[%s160] sm:$0x1] %v159
        %s162 = sadd.s32 0, 6
        %s163 = sadd.s32 %s115, %s162
        %s164 = sld [smem:[#allocation3 + %s163]]
        %s165 = scalar_lea.vmem [#allocation4], %s164
        %v166 = vld [vmem:[%s165] sm:$0x1]
        %v167 = vmul.f32 %v166, 11.313708
        %s168 = scalar_lea.vmem %s114, %s162 [#allocation7]
        %169 = vst [vmem:[%s168] sm:$0x1] %v167
        %s170 = sadd.s32 0, 7
        %s171 = sadd.s32 %s115, %s170
        %s172 = sld [smem:[#allocation3 + %s171]]
        %s173 = scalar_lea.vmem [#allocation4], %s172
        %v174 = vld [vmem:[%s173] sm:$0x1]
        %v175 = vmul.f32 %v174, 11.313708
        %s176 = scalar_lea.vmem %s114, %s170 [#allocation7]
        %177 = vst [vmem:[%s176] sm:$0x1] %v175
        %s178 = sand.u32 %s50, 1
        %s179 = scalar_lea.sflag [#allocation6], %s178
        %s180 = sand.u32 %s50, 1
        %s181 = smul.addr %s180, 8
        %s182 = scalar_lea.vmem [#allocation7], %s181
        // Predicated region
        $region29: #{tpu_custom_call.1} parent=23 // pred_check
          %p183 = pneg %p60
        $region30: #{tpu_custom_call.1} parent=23 // pred_check_branch
          %185 = sbr.rel (%p183) target = $region32
        $region31: #{tpu_custom_call.1} parent=23 // pred_region
          %s187 = ssub.s32 128, 128
          %188 = vsyncadd %s179, %s187
          %s189 = smul.addr %s21, 128
          %s190 = scalar_lea.hbm %s2, %s189
          %s192 = sshll.u32 %s182, 4
          %s193 = int_to_ptr.vmem [resolvable:$true] %s192
          %195 = dma.vmem_to_hbm [thread:$0]  %s193, 128, %s190, %s179
        $region32: #{tpu_custom_call.1} parent=23 // pred_fallthru
          _
      $region24: #{tpu_custom_call.1} parent=5 // pred_fallthru
        _
      %p196 = scmp.le.s32.totalorder 2, %s16
      // Predicated region
      $region33: #{tpu_custom_call.1} parent=5 // pred_check
        %p197 = pneg %p196
      $region34: #{tpu_custom_call.1} parent=5 // pred_check_branch
        %199 = sbr.rel (%p197) target = $region36
      $region35: #{tpu_custom_call.1} parent=5 // pred_region
        %s200 = ssub.s32 %s16, 2
        // Predicated region
        $region37: #{tpu_custom_call.1} parent=35 // pred_check
          %p201 = pneg %p66
        $region38: #{tpu_custom_call.1} parent=35 // pred_check_branch
          %203 = sbr.rel (%p201) target = $region40
        $region39: #{tpu_custom_call.1} parent=35 // pred_region
          %s204 = sand.u32 %s51, 1
          %s205 = scalar_lea.sflag [#allocation6], %s204
          %s206 = sand.u32 %s51, 1
          %s207 = smul.addr %s206, 8
          %s208 = scalar_lea.vmem [#allocation7], %s207
          %209 = dma.done %s205, 128
        $region40: #{tpu_custom_call.1} parent=35 // pred_fallthru
          _
      $region36: #{tpu_custom_call.1} parent=5 // pred_fallthru
        _
    $region6: #{tpu_custom_call.1} parent=1 // loop_footer
      %s20 = sadd.s32 1, %s16
    $region7: #{tpu_custom_call.1} parent=1 // loop_footer_branch
      %15 = sbr.rel target = $region3
    $region8: #{tpu_custom_call.1} parent=1 // loop_exit
      _
    %210 = vsyncpa [#allocation5], 1
    %s211 = scalar_lea.sflag [#allocation5], 1
    %212 = vsyncpa %s211, 1
    %213 = vsyncpa [#allocation6], 1
    %s214 = scalar_lea.sflag [#allocation6], 1
    %215 = vsyncpa %s214, 1

</llo_original>
